<compile_context>
chip_gen: v7x
topology: tpu7x:2x2x1
jax: 0.10.0
libtpu: 0.0.40
codegen_flags: <defaults>
</compile_context>

<pallas_src>
import jax
import jax.numpy as jnp
from jax import lax
from jax.experimental import pallas as pl
from jax.experimental.pallas import tpu as pltpu

EPS = 1e-5  # nn.LayerNorm default


def _adaln_kernel(x_ref, scale_ref, shift_ref, o_ref):
    # x_ref:     (bb, tn, C)  token tile (possibly spanning several batches)
    # scale_ref: (bb, 1,  C)  per-batch effective scale  = gamma * (1 + w)
    # shift_ref: (bb, 1,  C)  per-batch effective shift  = beta * (1 + w) + b
    x = x_ref[...].astype(jnp.float32)
    scale = scale_ref[...].astype(jnp.float32)
    shift = shift_ref[...].astype(jnp.float32)

    # One-pass LayerNorm statistics over the last dim C (clamped variance).
    inv_c = jnp.float32(1.0 / x.shape[-1])
    mean = jnp.sum(x, axis=-1, keepdims=True) * inv_c
    mean_sq = jnp.sum(x * x, axis=-1, keepdims=True) * inv_c
    var = jnp.maximum(mean_sq - mean * mean, 0.0)

    x_norm = (x - mean) * lax.rsqrt(var + EPS)
    o_ref[...] = (x_norm * scale + shift).astype(o_ref.dtype)


def _vmem_policy():
    """Generation-aware (tile_budget_bytes, vmem_limit_bytes)."""
    try:
        phys = int(getattr(pltpu.get_tpu_info(), "vmem_capacity_bytes", 0))
    except Exception:
        phys = 0
    if phys >= (100 << 20):
        # v5e / v6e: 128 MiB physical VMEM — raise scoped limit, big tiles.
        return 48 << 20, 64 << 20
    if phys > 0:
        # v7x: 64 MiB per TC — cap the tile budget, leave scratch headroom.
        return 40 << 20, 48 << 20
    # Unknown generation: conservative, safe on every chip.
    return 32 << 20, 40 << 20


def _pick_tiles(B, N, C, itemsize, budget_bytes):
    """Pick (bb, tn) so the double-buffered in+out footprint fits the budget."""
    sub = {4: 8, 2: 16, 1: 32}.get(itemsize, 8)   # sublane multiple per dtype
    per_row = 4 * C * itemsize                    # 2 buffers x (in + out) / row
    rows = max(sub, budget_bytes // max(per_row, 1))
    if rows >= N:
        # Small-N path: whole batch rows per block; pack several batches.
        tn = N
        bb = max(1, min(B, rows // max(N, 1)))
    else:
        # Large-N path: tile the token axis with a sublane-aligned tile.
        bb = 1
        tn = max(sub, min((rows // sub) * sub, N))
    return int(bb), int(tn)


def adaptive_layer_norm(x, condition, w_lin, b_lin, gamma, beta, *, tiles=None):
    """x: (B, N, C); condition: (B, Dc); w_lin: (Dc, 2C); b_lin: (2C,)."""
    B, N, C = x.shape
    Dc = condition.shape[-1]
    assert w_lin.shape == (Dc, 2 * C)

    # Hoisted condition projection (tiny, native-dtype MXU matmul).
    mod = jnp.dot(condition, w_lin, preferred_element_type=jnp.float32)
    mod = mod + b_lin.astype(jnp.float32)          # (B, 2C)
    weight = mod[:, :C]
    bias = mod[:, C:]

    # Fold the LayerNorm affine and the adaptive modulation into one
    # per-batch effective scale/shift (tiny XLA elementwise).
    one_plus_w = 1.0 + weight                       # (B, C)
    eff_scale = (gamma.astype(jnp.float32)[None, :] * one_plus_w).reshape(B, 1, C)
    eff_shift = (beta.astype(jnp.float32)[None, :] * one_plus_w + bias).reshape(B, 1, C)

    tile_budget, vmem_limit = _vmem_policy()
    if tiles is None:
        bb, tn = _pick_tiles(B, N, C, jnp.dtype(x.dtype).itemsize, tile_budget)
    else:
        bb, tn = tiles
    grid = (pl.cdiv(B, bb), pl.cdiv(N, tn))

    return pl.pallas_call(
        _adaln_kernel,
        out_shape=jax.ShapeDtypeStruct((B, N, C), x.dtype),
        grid_spec=pltpu.PrefetchScalarGridSpec(
            num_scalar_prefetch=0,
            grid=grid,
            in_specs=[
                pl.BlockSpec((bb, tn, C), lambda i, j: (i, j, 0)),   # x tile
                pl.BlockSpec((bb, 1, C), lambda i, j: (i, 0, 0)),    # eff scale
                pl.BlockSpec((bb, 1, C), lambda i, j: (i, 0, 0)),    # eff shift
            ],
            out_specs=pl.BlockSpec((bb, tn, C), lambda i, j: (i, j, 0)),
        ),
        compiler_params=pltpu.CompilerParams(
            dimension_semantics=("parallel", "parallel"),
            vmem_limit_bytes=int(vmem_limit)),
    )(x, eff_scale, eff_shift)


def _reference(x, condition, w_lin, b_lin, gamma, beta):
    mean = jnp.mean(x, axis=-1, keepdims=True)
    var = jnp.mean((x - mean) ** 2, axis=-1, keepdims=True)
    xn = (x - mean) / jnp.sqrt(var + EPS) * gamma + beta
    mod = condition @ w_lin + b_lin
    C = x.shape[-1]
    weight = mod[:, None, :C]
    bias = mod[:, None, C:]
    return xn * (1.0 + weight) + bias


if __name__ == "__main__":
    key = jax.random.PRNGKey(0)
    k1, k2, k3, k4 = jax.random.split(key, 4)

    # --- primary small shape (exercises the small-N packed-batch path) ---
    B, N, C = 2, 8, 32
    condition_dim = 16

    x = jax.random.normal(k1, (B, N, C), dtype=jnp.float32)
    condition = jax.random.normal(k2, (B, condition_dim), dtype=jnp.float32)

    # deterministic synthetic parameters (mimic nn.Linear + nn.LayerNorm init)
    w_lin = jax.random.normal(k3, (condition_dim, 2 * C), jnp.float32) * 0.05
    b_lin = jax.random.normal(k4, (2 * C,), jnp.float32) * 0.05
    gamma = jnp.ones((C,), jnp.float32)    # LayerNorm weight (default init)
    beta = jnp.zeros((C,), jnp.float32)    # LayerNorm bias (default init)

    out = adaptive_layer_norm(x, condition, w_lin, b_lin, gamma, beta)
    out = jax.block_until_ready(out)
    ref = _reference(x, condition, w_lin, b_lin, gamma, beta)
    assert out.shape == (B, N, C)
    assert jnp.allclose(out, ref, atol=1e-4, rtol=1e-4), "mismatch vs reference (small)"

    # --- second shape forcing the token-tiled path (bb=1, tn<N, 2-D grid) ---
    B2, N2, C2 = 2, 64, 128
    x2 = jax.random.normal(k1, (B2, N2, C2), dtype=jnp.float32)
    cond2 = jax.random.normal(k2, (B2, condition_dim), dtype=jnp.float32)
    w_lin2 = jax.random.normal(k3, (condition_dim, 2 * C2), jnp.float32) * 0.05
    b_lin2 = jax.random.normal(k4, (2 * C2,), jnp.float32) * 0.05
    gamma2 = jnp.ones((C2,), jnp.float32)
    beta2 = jnp.zeros((C2,), jnp.float32)

    out2 = adaptive_layer_norm(x2, cond2, w_lin2, b_lin2, gamma2, beta2,
                               tiles=(1, 16))
    out2 = jax.block_until_ready(out2)
    ref2 = _reference(x2, cond2, w_lin2, b_lin2, gamma2, beta2)
    assert jnp.allclose(out2, ref2, atol=1e-4, rtol=1e-4), "mismatch vs reference (tiled)"

    # TODO(synk): AdaptiveMixin is abstract; this concretizes super().forward as
    # LayerNorm and _forward as a 2-way chunk of the projected condition.
    print("KERNEL_OK")
</pallas_src>

<mosaic_0001>
module attributes {stable_mosaic.version = 11 : i64} {
  func.func @_adaln_kernel(%arg0: i32, %arg1: i32, %arg2: memref<2x8x32xf32, #tpu.memory_space<vmem>>, %arg3: memref<2x1x32xf32, #tpu.memory_space<vmem>>, %arg4: memref<2x1x32xf32, #tpu.memory_space<vmem>>, %arg5: memref<2x8x32xf32, #tpu.memory_space<vmem>>) attributes {dimension_semantics = [#tpu.dimension_semantics<parallel>, #tpu.dimension_semantics<parallel>], iteration_bounds = array<i64: 1, 1>, scalar_prefetch = 0 : i64, scratch_operands = 0 : i64, tpu.core_type = #tpu.core_type<tc>, window_params = [{transform_indices = @transform_0, window_bounds = array<i64: 2, 8, 32>}, {transform_indices = @transform_1, window_bounds = array<i64: 2, 1, 32>}, {transform_indices = @transform_2, window_bounds = array<i64: 2, 1, 32>}, {transform_indices = @transform_3, window_bounds = array<i64: 2, 8, 32>}]} {
    %c0 = arith.constant 0 : index
    %c0_0 = arith.constant 0 : index
    %c0_1 = arith.constant 0 : index
    %0 = vector.load %arg2[%c0, %c0_0, %c0_1] : memref<2x8x32xf32, #tpu.memory_space<vmem>>, vector<2x8x32xf32>
    %c0_2 = arith.constant 0 : index
    %c0_3 = arith.constant 0 : index
    %c0_4 = arith.constant 0 : index
    %1 = vector.load %arg3[%c0_2, %c0_3, %c0_4] : memref<2x1x32xf32, #tpu.memory_space<vmem>>, vector<2x1x32xf32>
    %c0_5 = arith.constant 0 : index
    %c0_6 = arith.constant 0 : index
    %c0_7 = arith.constant 0 : index
    %2 = vector.load %arg4[%c0_5, %c0_6, %c0_7] : memref<2x1x32xf32, #tpu.memory_space<vmem>>, vector<2x1x32xf32>
    %cst = arith.constant dense<0.000000e+00> : vector<2x8xf32>
    %3 = vector.multi_reduction <add>, %0, %cst [2] : vector<2x8x32xf32> to vector<2x8xf32>
    %4 = vector.shape_cast %3 : vector<2x8xf32> to vector<2x8x1xf32>
    %cst_8 = arith.constant 3.125000e-02 : f32
    %5 = vector.broadcast %cst_8 : f32 to vector<2x8x1xf32>
    %6 = arith.mulf %4, %5 : vector<2x8x1xf32>
    %7 = arith.mulf %0, %0 : vector<2x8x32xf32>
    %cst_9 = arith.constant dense<0.000000e+00> : vector<2x8xf32>
    %8 = vector.multi_reduction <add>, %7, %cst_9 [2] : vector<2x8x32xf32> to vector<2x8xf32>
    %9 = vector.shape_cast %8 : vector<2x8xf32> to vector<2x8x1xf32>
    %cst_10 = arith.constant 3.125000e-02 : f32
    %10 = vector.broadcast %cst_10 : f32 to vector<2x8x1xf32>
    %11 = arith.mulf %9, %10 : vector<2x8x1xf32>
    %12 = arith.mulf %6, %6 : vector<2x8x1xf32>
    %13 = arith.subf %11, %12 : vector<2x8x1xf32>
    %cst_11 = arith.constant 0.000000e+00 : f32
    %14 = vector.broadcast %cst_11 : f32 to vector<2x8x1xf32>
    %15 = arith.maximumf %13, %14 : vector<2x8x1xf32>
    %16 = vector.broadcast %6 : vector<2x8x1xf32> to vector<2x8x32xf32>
    %17 = arith.subf %0, %16 : vector<2x8x32xf32>
    %cst_12 = arith.constant 9.99999974E-6 : f32
    %18 = vector.broadcast %cst_12 : f32 to vector<2x8x1xf32>
    %19 = arith.addf %15, %18 : vector<2x8x1xf32>
    %20 = math.rsqrt %19 : vector<2x8x1xf32>
    %21 = vector.broadcast %20 : vector<2x8x1xf32> to vector<2x8x32xf32>
    %22 = arith.mulf %17, %21 : vector<2x8x32xf32>
    %23 = vector.broadcast %1 : vector<2x1x32xf32> to vector<2x8x32xf32>
    %24 = arith.mulf %22, %23 : vector<2x8x32xf32>
    %25 = vector.broadcast %2 : vector<2x1x32xf32> to vector<2x8x32xf32>
    %26 = arith.addf %24, %25 : vector<2x8x32xf32>
    %c0_13 = arith.constant 0 : index
    %c0_14 = arith.constant 0 : index
    %c0_15 = arith.constant 0 : index
    %27 = vector.load %arg5[%c0_13, %c0_14, %c0_15] : memref<2x8x32xf32, #tpu.memory_space<vmem>>, vector<2x8x32xf32>
    tpu.vector_store %arg5[%c0_13, %c0_14, %c0_15], %26 {strides = array<i32>} : memref<2x8x32xf32, #tpu.memory_space<vmem>>, vector<2x8x32xf32>,
    return
  }
  func.func @transform_0(%arg0: i32, %arg1: i32) -> (i32, i32, i32) {
    %c0_i32 = arith.constant 0 : i32
    %c0_i32_0 = arith.constant 0 : i32
    return %arg0, %arg1, %c0_i32 : i32, i32, i32
  }
  func.func @transform_1(%arg0: i32, %arg1: i32) -> (i32, i32, i32) {
    %c0_i32 = arith.constant 0 : i32
    %c0_i32_0 = arith.constant 0 : i32
    %c0_i32_1 = arith.constant 0 : i32
    return %arg0, %c0_i32, %c0_i32_0 : i32, i32, i32
  }
  func.func @transform_2(%arg0: i32, %arg1: i32) -> (i32, i32, i32) {
    %c0_i32 = arith.constant 0 : i32
    %c0_i32_0 = arith.constant 0 : i32
    %c0_i32_1 = arith.constant 0 : i32
    return %arg0, %c0_i32, %c0_i32_0 : i32, i32, i32
  }
  func.func @transform_3(%arg0: i32, %arg1: i32) -> (i32, i32, i32) {
    %c0_i32 = arith.constant 0 : i32
    %c0_i32_0 = arith.constant 0 : i32
    return %arg0, %arg1, %c0_i32 : i32, i32, i32
  }
}

</mosaic_0001>

<llo_original>
// kernel: tpu_custom_call.1
$region0: #{tpu_custom_call.1}
  #allocation0 [shape = 'u32[]', space=smem, size = 0x4, offset = 0x4, fixed_abs, tag = 'smem constant byte address 0x4 - core index']
  #allocation1 [shape = 'u32[144,128]{1,0:T(1,128)}', space=vmem, size = 0x12000, scoped, tag = 'internal scratch']
  %s0 = inlined_call_operand.hbm [shape: f32[2,8,32], index: 0, kind: input, shape index: {}]
  %s1 = inlined_call_operand.vmem [shape: f32[2,1,32], index: 1, kind: input, shape index: {}]
  %s2 = inlined_call_operand.vmem [shape: f32[2,1,32], index: 2, kind: input, shape index: {}]
  %s3 = inlined_call_operand.hbm [shape: f32[2,8,32], index: 3, kind: output, shape index: {}]
  %s4 = sld [smem:[#allocation0]]
  $region26: #{tpu_custom_call.1} parent=0
    _
  %s6 = ssub.s32 1, %s4
  %s7 = scalar_select 0, %s6, %s4
  $region1: #{tpu_custom_call.1} parent=0
    #allocation2 [shape = 'u8[8192]{0}', space=vmem, size = 0x2000, scoped, tag = 'input window, operand 0, single buffered']
    #allocation3 [shape = 's32[1]{0}', space=sflag, size = 0x4, scoped, tag = 'scoped memory for tpu_custom_call.1']
    #allocation4 [shape = 's32[1]{0}', space=sflag, size = 0x4, scoped, tag = 'scoped memory for tpu_custom_call.1']
    #allocation5 [shape = 'u8[8192]{0}', space=vmem, size = 0x2000, scoped, tag = 'output window, operand 0, single buffered']
    %8 = vsyncpa [#allocation3], 0
    %9 = vsyncpa [#allocation4], 0
    // Predicated region
    $region2: #{tpu_custom_call.1} parent=1 // pred_check
      _
    $region3: #{tpu_custom_call.1} parent=1 // pred_check_branch
      %11 = sbr.rel (0) target = $region5
    $region4: #{tpu_custom_call.1} parent=1 // pred_region
      %s13 = ssub.s32 256, 256
      %14 = vsyncadd [#allocation3], %s13
      %s15 = sshll.u32 [#allocation2], 4
      %s16 = int_to_ptr.vmem [resolvable:$true] %s15
      %21 = dma.hbm_to_vmem [thread:$0]  %s0, 256, %s16, [#allocation3], 128, 128, 8
    $region5: #{tpu_custom_call.1} parent=1 // pred_fallthru
      _
    // Predicated region
    $region6: #{tpu_custom_call.1} parent=1 // pred_check
      _
    $region7: #{tpu_custom_call.1} parent=1 // pred_check_branch
      %23 = sbr.rel (0) target = $region9
    $region8: #{tpu_custom_call.1} parent=1 // pred_region
      _
    $region9: #{tpu_custom_call.1} parent=1 // pred_fallthru
      _
    // Predicated region
    $region10: #{tpu_custom_call.1} parent=1 // pred_check
      _
    $region11: #{tpu_custom_call.1} parent=1 // pred_check_branch
      %25 = sbr.rel (0) target = $region13
    $region12: #{tpu_custom_call.1} parent=1 // pred_region
      _
    $region13: #{tpu_custom_call.1} parent=1 // pred_fallthru
      _
    // Predicated region
    $region14: #{tpu_custom_call.1} parent=1 // pred_check
      _
    $region15: #{tpu_custom_call.1} parent=1 // pred_check_branch
      %27 = sbr.rel (0) target = $region17
    $region16: #{tpu_custom_call.1} parent=1 // pred_region
      %28 = dma.done [#allocation3], 256
    $region17: #{tpu_custom_call.1} parent=1 // pred_fallthru
      _
    %v29 = vld [vmem:[#allocation2] sm:$0xff]
    %v30 = vld [vmem:[#allocation2 + $0x8] sm:$0xff]
    %v31 = vld [vmem:[%s1] sm:$0x1]
    %v32 = vld [vmem:[%s1 + $0x1] sm:$0x1]
    %v33 = vld [vmem:[%s2] sm:$0x1]
    %v34 = vld [vmem:[%s2 + $0x1] sm:$0x1]
    %vm35 = vcmask 261120
    %v36 = vsel %vm35, %v29, 0.0
    %37 = vadd.xlane.f32.xlu0 %v36
    %v38 = vpop.xlane.xlu0 %37
    %v39 = vsel %vm35, %v30, 0.0
    %40 = vadd.xlane.f32.xlu0 %v39
    %v41 = vpop.xlane.xlu0 %40
    %v42 = vmul.f32 %v38, 0.03125
    %v43 = vmul.f32 %v41, 0.03125
    %v44 = vmul.f32 %v29, %v29
    %v45 = vmul.f32 %v30, %v30
    %v46 = vsel %vm35, %v44, 0.0
    %47 = vadd.xlane.f32.xlu0 %v46
    %v48 = vpop.xlane.xlu0 %47
    %v49 = vsel %vm35, %v45, 0.0
    %50 = vadd.xlane.f32.xlu0 %v49
    %v51 = vpop.xlane.xlu0 %50
    %v52 = vmul.f32 %v48, 0.03125
    %v53 = vmul.f32 %v51, 0.03125
    %v54 = vmul.f32 %v42, %v42
    %v55 = vmul.f32 %v43, %v43
    %v56 = vsub.f32 %v52, %v54
    %v57 = vsub.f32 %v53, %v55
    %v58 = vmax.f32 %v56, 0.0
    %v59 = vmax.f32 %v57, 0.0
    %v60 = vsub.f32 %v29, %v42
    %v61 = vsub.f32 %v30, %v43
    %v62 = vadd.f32 %v58, 1e-05
    %v63 = vadd.f32 %v59, 1e-05
    %v64 = vrsqrt.pop %v62
    %v65 = vrsqrt.pop %v63
    %v66 = vmul.f32 %v60, %v64
    %v67 = vmul.f32 %v61, %v65
    %v70 = vlaneseq
    %v71 = vshrl.u32 %v70, 7
    %v72 = vsub.s32 0, %v71
    %v73 = vrot.slane %v31, %v72
    %v74 = vlaneseq
    %v75 = vshrl.u32 %v74, 7
    %v76 = vsub.s32 0, %v75
    %v77 = vrot.slane %v32, %v76
    %v80 = vmul.f32 %v66, %v73
    %v81 = vmul.f32 %v67, %v77
    %v84 = vlaneseq
    %v85 = vshrl.u32 %v84, 7
    %v86 = vsub.s32 0, %v85
    %v87 = vrot.slane %v33, %v86
    %v88 = vlaneseq
    %v89 = vshrl.u32 %v88, 7
    %v90 = vsub.s32 0, %v89
    %v91 = vrot.slane %v34, %v90
    %v94 = vadd.f32 %v80, %v87
    %v95 = vadd.f32 %v81, %v91
    %96 = vst.msk [vmem:[#allocation5] sm:$0xff] %vm35, %v94
    %97 = vst.msk [vmem:[#allocation5 + $0x8] sm:$0xff] %vm35, %v95
    // Predicated region
    $region18: #{tpu_custom_call.1} parent=1 // pred_check
      _
    $region19: #{tpu_custom_call.1} parent=1 // pred_check_branch
      %99 = sbr.rel (0) target = $region21
    $region20: #{tpu_custom_call.1} parent=1 // pred_region
      %s101 = ssub.s32 256, 256
      %102 = vsyncadd [#allocation4], %s101
      %s103 = sshll.u32 [#allocation5], 4
      %s104 = int_to_ptr.vmem [resolvable:$true] %s103
      %109 = dma.vmem_to_hbm [thread:$0]  %s104, 256, %s3, [#allocation4], 128, 128, 8
    $region21: #{tpu_custom_call.1} parent=1 // pred_fallthru
      _
    // Predicated region
    $region22: #{tpu_custom_call.1} parent=1 // pred_check
      _
    $region23: #{tpu_custom_call.1} parent=1 // pred_check_branch
      %111 = sbr.rel (0) target = $region25
    $region24: #{tpu_custom_call.1} parent=1 // pred_region
      %112 = dma.done [#allocation4], 256
    $region25: #{tpu_custom_call.1} parent=1 // pred_fallthru
      _
    %113 = vsyncpa [#allocation3], 1
    %114 = vsyncpa [#allocation4], 1

</llo_original>
